<compile_context>
chip_gen: v5e
topology: v5e:2x2
jax: 0.10.0
libtpu: 0.0.40
codegen_flags: <defaults>
</compile_context>

<pallas_src>
import math

import jax
import jax.numpy as jnp
from jax.experimental import pallas as pl
from jax.experimental.pallas import tpu as pltpu

_LANES = 128          # native lane width
_TB_MAX = 32768       # (8, 32768) f32 block = 1 MiB; in+out double-buffered = 4 MiB
_TB_SPLIT = 16384     # with >= 2*_TB_SPLIT columns, force >= 2 grid steps (v7x megacore)
_SMALL_BATCH_JNP = 1024   # below this many matrices, plain jnp beats the launch cost


def _round_up(n, m):
    return ((n + m - 1) // m) * m


def _choose_lane_tile(cols):
    """Lane-tile width: big enough to amortize per-step overhead, small enough
    to double-buffer in+out under the v5e 16 MiB scoped-VMEM default, and with
    >= 2 grid steps when there is enough data (v7x two-TensorCore split)."""
    cols = max(int(cols), 1)
    if cols >= 2 * _TB_SPLIT:
        return min(_TB_MAX, _round_up(pl.cdiv(cols, 2), _LANES))
    return _round_up(cols, _LANES)


def _plan(cols):
    tb = _choose_lane_tile(cols)
    grid = pl.cdiv(max(int(cols), 1), tb)
    return tb, grid, grid * tb


def _inv2x2_kernel(x_ref, o_ref):
    """x_ref/o_ref: (8, TB) f32 tiles.

    Each lane column holds two row-major 2x2 matrices on the sublane axis:
    rows [a0,b0,c0,d0,a1,b1,c1,d1].  Pure VPU/EUP math -- no MXU.
    """
    x = x_ref[...]                                   # one lane-dense vld pass
    a0, b0, c0, d0 = x[0:1], x[1:2], x[2:3], x[3:4]
    a1, b1, c1, d1 = x[4:5], x[5:6], x[6:7], x[7:8]

    # det and its reciprocal per matrix (reciprocal on the EUP path).
    inv0 = pl.reciprocal(a0 * d0 - b0 * c0, approx=False)
    inv1 = pl.reciprocal(a1 * d1 - b1 * c1, approx=False)
    n0 = -inv0
    n1 = -inv1

    # adj([[a,b],[c,d]]) = [[d,-b],[-c,a]]  ->  rows [d,-b,-c,a] per matrix.
    # Single whole-tile concatenate + one unmasked (8, TB) store.
    o_ref[...] = jnp.concatenate(
        [d0 * inv0, b0 * n0, c0 * n0, a0 * inv0,
         d1 * inv1, b1 * n1, c1 * n1, a1 * inv1],
        axis=0)


def _call_kernel(packed, tb, grid):
    """packed: (8, grid*tb) f32, lane-dense and tile-aligned."""
    return pl.pallas_call(
        _inv2x2_kernel,
        out_shape=jax.ShapeDtypeStruct(packed.shape, jnp.float32),
        grid=(grid,),
        in_specs=[pl.BlockSpec((8, tb), lambda i: (0, i))],
        out_specs=pl.BlockSpec((8, tb), lambda i: (0, i)),
        compiler_params=pltpu.CompilerParams(
            dimension_semantics=("parallel",)),
    )(packed)


def inverse_2x2_packed(packed):
    """Inverse in the packed layout: (8, C) f32, column c = matrices 2c, 2c+1.

    Callers that keep this layout across the surrounding program skip the
    pack/unpack transposes entirely; the op is then one HBM read + one write.
    """
    assert packed.ndim == 2 and packed.shape[0] == 8
    c = packed.shape[1]
    tb, grid, c_pad = _plan(c)
    p = packed.astype(jnp.float32)
    if c_pad != c:
        p = jnp.pad(p, ((0, 0), (0, c_pad - c)))     # padded cols -> inf, discarded
    out = _call_kernel(p, tb, grid)
    return out if c_pad == c else out[:, :c]


def _inverse_2x2_jnp(x):
    """Closed-form reference (and small-batch fast path) in plain jnp."""
    a = x[..., 0, 0]
    b = x[..., 0, 1]
    c = x[..., 1, 0]
    d = x[..., 1, 1]
    det = a * d - b * c
    adj = jnp.stack(
        [jnp.stack([d, -b], axis=-1), jnp.stack([-c, a], axis=-1)], axis=-2)
    return adj / det[..., None, None]


def inverse_2x2(x, *, small_batch_jnp=True):
    """Pallas-backed equivalent of torch.inverse(x) for (batched) 2x2 matrices."""
    assert x.shape[-2:] == (2, 2), "only (batched) 2x2 matrices are supported"
    orig_shape = x.shape
    orig_dtype = x.dtype
    b = math.prod(x.shape[:-2])          # == 1 for a single unbatched matrix

    # Small-batch fast path: the whole problem is a few KiB, so the
    # pallas_call launch plus pack/unpack passes would dominate; let XLA fuse
    # the closed form directly.
    if small_batch_jnp and b <= _SMALL_BATCH_JNP:
        return _inverse_2x2_jnp(x.astype(jnp.float32)).astype(orig_dtype)

    cols = (b + 1) // 2                  # two matrices per lane column
    tb, grid, c_pad = _plan(cols)

    # Pack to (8, c_pad): flat remainder zero-padded (fuses into the transpose
    # below -- no extra HBM pass; padded columns yield inf and are discarded).
    flat = x.astype(jnp.float32).reshape(b * 4)
    if c_pad * 8 != b * 4:
        flat = jnp.pad(flat, (0, c_pad * 8 - b * 4))
    # NOTE: this transpose and the one on the way out are each a full HBM
    # read+write pass in XLA.  Use inverse_2x2_packed to avoid them when the
    # surrounding program can keep the packed layout.
    packed = flat.reshape(c_pad, 8).T    # (8, c_pad), lane-dense

    out = _call_kernel(packed, tb, grid)             # (8, c_pad)

    inv_flat = out.T.reshape(c_pad * 8)[: b * 4]
    return inv_flat.reshape(orig_shape).astype(orig_dtype)


if __name__ == "__main__":
    key = jax.random.PRNGKey(0)

    # Batched example large enough to take the Pallas path (still tiny: 128 KiB).
    B = 8192
    noise = jax.random.normal(key, (B, 2, 2), dtype=jnp.float32) * 0.5
    x = noise + 2.0 * jnp.eye(2, dtype=jnp.float32)   # well conditioned

    out = jax.block_until_ready(inverse_2x2(x))
    assert out.shape == x.shape

    ref = _inverse_2x2_jnp(x)
    assert jnp.allclose(out, ref, atol=1e-5, rtol=1e-4), "mismatch vs analytic ref"

    prod = jnp.einsum("bij,bjk->bik", x, out)
    eye = jnp.broadcast_to(jnp.eye(2, dtype=jnp.float32), prod.shape)
    assert jnp.allclose(prod, eye, atol=1e-4, rtol=1e-4), "x @ inv(x) != I"

    # Packed-layout path (no wrapper transposes).
    packed_in = x.reshape(-1).reshape(-1, 8).T        # (8, B//2)
    out_packed = jax.block_until_ready(inverse_2x2_packed(packed_in))
    inv_from_packed = out_packed.T.reshape(B, 2, 2)
    assert jnp.allclose(inv_from_packed, ref, atol=1e-5, rtol=1e-4), "packed path mismatch"

    # Small batch: jnp fast path and forced-Pallas path must both match.
    xs = x[:256]
    ref_s = _inverse_2x2_jnp(xs)
    out_s_fast = jax.block_until_ready(inverse_2x2(xs))
    out_s_pallas = jax.block_until_ready(inverse_2x2(xs, small_batch_jnp=False))
    assert jnp.allclose(out_s_fast, ref_s, atol=1e-5, rtol=1e-4)
    assert jnp.allclose(out_s_pallas, ref_s, atol=1e-5, rtol=1e-4)

    # Odd batch size exercises the remainder padding through the kernel.
    xo = x[:1001]
    out_o = jax.block_until_ready(inverse_2x2(xo, small_batch_jnp=False))
    assert jnp.allclose(out_o, _inverse_2x2_jnp(xo), atol=1e-5, rtol=1e-4)

    # Unbatched (2, 2): default (jnp) path and forced-Pallas path.
    single = x[0]
    out_single = jax.block_until_ready(inverse_2x2(single))
    out_single_p = jax.block_until_ready(inverse_2x2(single, small_batch_jnp=False))
    eye2 = jnp.eye(2, dtype=jnp.float32)
    assert jnp.allclose(single @ out_single, eye2, atol=1e-4, rtol=1e-4)
    assert jnp.allclose(single @ out_single_p, eye2, atol=1e-4, rtol=1e-4)

    print("KERNEL_OK")
</pallas_src>

<mosaic_0001>
module attributes {stable_mosaic.version = 11 : i64} {
  func.func @_inv2x2_kernel(%arg0: i32, %arg1: memref<8x4096xf32, #tpu.memory_space<vmem>>, %arg2: memref<8x4096xf32, #tpu.memory_space<vmem>>) attributes {dimension_semantics = [#tpu.dimension_semantics<parallel>], iteration_bounds = array<i64: 1>, scalar_prefetch = 0 : i64, scratch_operands = 0 : i64, tpu.core_type = #tpu.core_type<tc>, window_params = [{transform_indices = @transform_0, window_bounds = array<i64: 8, 4096>}, {transform_indices = @transform_1, window_bounds = array<i64: 8, 4096>}]} {
    %c0 = arith.constant 0 : index
    %c0_0 = arith.constant 0 : index
    %0 = vector.load %arg1[%c0, %c0_0] : memref<8x4096xf32, #tpu.memory_space<vmem>>, vector<8x4096xf32>
    %1 = vector.extract_strided_slice %0 {offsets = [0, 0], sizes = [1, 4096], strides = [1, 1]} : vector<8x4096xf32> to vector<1x4096xf32>
    %2 = vector.extract_strided_slice %0 {offsets = [1, 0], sizes = [1, 4096], strides = [1, 1]} : vector<8x4096xf32> to vector<1x4096xf32>
    %3 = vector.extract_strided_slice %0 {offsets = [2, 0], sizes = [1, 4096], strides = [1, 1]} : vector<8x4096xf32> to vector<1x4096xf32>
    %4 = vector.extract_strided_slice %0 {offsets = [3, 0], sizes = [1, 4096], strides = [1, 1]} : vector<8x4096xf32> to vector<1x4096xf32>
    %5 = vector.extract_strided_slice %0 {offsets = [4, 0], sizes = [1, 4096], strides = [1, 1]} : vector<8x4096xf32> to vector<1x4096xf32>
    %6 = vector.extract_strided_slice %0 {offsets = [5, 0], sizes = [1, 4096], strides = [1, 1]} : vector<8x4096xf32> to vector<1x4096xf32>
    %7 = vector.extract_strided_slice %0 {offsets = [6, 0], sizes = [1, 4096], strides = [1, 1]} : vector<8x4096xf32> to vector<1x4096xf32>
    %8 = vector.extract_strided_slice %0 {offsets = [7, 0], sizes = [1, 4096], strides = [1, 1]} : vector<8x4096xf32> to vector<1x4096xf32>
    %9 = arith.mulf %1, %4 : vector<1x4096xf32>
    %10 = arith.mulf %2, %3 : vector<1x4096xf32>
    %11 = arith.subf %9, %10 : vector<1x4096xf32>
    %12 = tpu.reciprocal %11 : vector<1x4096xf32> -> vector<1x4096xf32>
    %13 = arith.mulf %5, %8 : vector<1x4096xf32>
    %14 = arith.mulf %6, %7 : vector<1x4096xf32>
    %15 = arith.subf %13, %14 : vector<1x4096xf32>
    %16 = tpu.reciprocal %15 : vector<1x4096xf32> -> vector<1x4096xf32>
    %cst = arith.constant 0.000000e+00 : f32
    %17 = vector.broadcast %cst : f32 to vector<1x4096xf32>
    %18 = arith.subf %17, %12 : vector<1x4096xf32>
    %cst_1 = arith.constant 0.000000e+00 : f32
    %19 = vector.broadcast %cst_1 : f32 to vector<1x4096xf32>
    %20 = arith.subf %19, %16 : vector<1x4096xf32>
    %21 = arith.mulf %4, %12 : vector<1x4096xf32>
    %22 = arith.mulf %2, %18 : vector<1x4096xf32>
    %23 = arith.mulf %3, %18 : vector<1x4096xf32>
    %24 = arith.mulf %1, %12 : vector<1x4096xf32>
    %25 = arith.mulf %8, %16 : vector<1x4096xf32>
    %26 = arith.mulf %6, %20 : vector<1x4096xf32>
    %27 = arith.mulf %7, %20 : vector<1x4096xf32>
    %28 = arith.mulf %5, %16 : vector<1x4096xf32>
    %29 = tpu.concatenate %21, %22, %23, %24, %25, %26, %27, %28 in 0 : vector<1x4096xf32>, vector<1x4096xf32>, vector<1x4096xf32>, vector<1x4096xf32>, vector<1x4096xf32>, vector<1x4096xf32>, vector<1x4096xf32>, vector<1x4096xf32> -> vector<8x4096xf32>
    %c0_2 = arith.constant 0 : index
    %c0_3 = arith.constant 0 : index
    %30 = vector.load %arg2[%c0_2, %c0_3] : memref<8x4096xf32, #tpu.memory_space<vmem>>, vector<8x4096xf32>
    tpu.vector_store %arg2[%c0_2, %c0_3], %29 {strides = array<i32>} : memref<8x4096xf32, #tpu.memory_space<vmem>>, vector<8x4096xf32>,
    return
  }
  func.func @transform_0(%arg0: i32) -> (i32, i32) {
    %c0_i32 = arith.constant 0 : i32
    %c0_i32_0 = arith.constant 0 : i32
    return %c0_i32, %arg0 : i32, i32
  }
  func.func @transform_1(%arg0: i32) -> (i32, i32) {
    %c0_i32 = arith.constant 0 : i32
    %c0_i32_0 = arith.constant 0 : i32
    return %c0_i32, %arg0 : i32, i32
  }
}

</mosaic_0001>

<llo_original>
// kernel: tpu_custom_call.1
$region0: #{tpu_custom_call.1}
  #allocation0 [shape = 'u32[]', space=smem, size = 0x4, offset = 0x4, fixed_abs, tag = 'smem constant byte address 0x4 - core index']
  #allocation1 [shape = 'u32[72,128]{1,0:T(1,128)}', space=vmem, size = 0x9000, scoped, tag = 'internal scratch']
  %s0 = inlined_call_operand.hbm [shape: f32[8,4096], index: 0, kind: input, shape index: {}]
  %s1 = inlined_call_operand.hbm [shape: f32[8,4096], index: 1, kind: output, shape index: {}]
  %s2 = sld [smem:[#allocation0]]
  $region18: #{tpu_custom_call.1} parent=0
    _
  %s4 = ssub.s32 1, %s2
  %s5 = scalar_select 0, %s4, %s2
  $region1: #{tpu_custom_call.1} parent=0
    #allocation2 [shape = 'u8[131072]{0}', space=vmem, size = 0x20000, scoped, tag = 'input window, operand 0, single buffered']
    #allocation3 [shape = 's32[1]{0}', space=sflag, size = 0x4, scoped, tag = 'scoped memory for tpu_custom_call.1']
    #allocation4 [shape = 's32[1]{0}', space=sflag, size = 0x4, scoped, tag = 'scoped memory for tpu_custom_call.1']
    #allocation5 [shape = 'u8[131072]{0}', space=vmem, size = 0x20000, scoped, tag = 'output window, operand 0, single buffered']
    %6 = vsyncpa [#allocation3], 0
    %7 = vsyncpa [#allocation4], 0
    // Predicated region
    $region2: #{tpu_custom_call.1} parent=1 // pred_check
      _
    $region3: #{tpu_custom_call.1} parent=1 // pred_check_branch
      %9 = sbr.rel (0) target = $region5
    $region4: #{tpu_custom_call.1} parent=1 // pred_region
      %11 = vsyncadd [#allocation3], 0
      %s13 = sshll.u32 %s0, 4
      %s14 = int_to_ptr.hbm [resolvable:$true] %s13
      %s15 = sshll.u32 [#allocation2], 4
      %s16 = int_to_ptr.vmem [resolvable:$true] %s15
      %18 = dma.hbm_to_vmem [thread:$0]  %s14, 4096, %s16, [#allocation3]
    $region5: #{tpu_custom_call.1} parent=1 // pred_fallthru
      _
    // Predicated region
    $region6: #{tpu_custom_call.1} parent=1 // pred_check
      _
    $region7: #{tpu_custom_call.1} parent=1 // pred_check_branch
      %20 = sbr.rel (0) target = $region9
    $region8: #{tpu_custom_call.1} parent=1 // pred_region
      %22 = dma.done [#allocation3], 4096
    $region9: #{tpu_custom_call.1} parent=1 // pred_fallthru
      _
    %v23 = vld [vmem:[#allocation2] sm:$0xff]
    %v24 = vld [vmem:[#allocation2 + $0x8] sm:$0xff]
    %v25 = vld [vmem:[#allocation2 + $0x10] sm:$0xff]
    %v26 = vld [vmem:[#allocation2 + $0x18] sm:$0xff]
    %v27 = vld [vmem:[#allocation2 + $0x20] sm:$0xff]
    %v28 = vld [vmem:[#allocation2 + $0x28] sm:$0xff]
    %v29 = vld [vmem:[#allocation2 + $0x30] sm:$0xff]
    %v30 = vld [vmem:[#allocation2 + $0x38] sm:$0xff]
    %v31 = vld [vmem:[#allocation2 + $0x40] sm:$0xff]
    %v32 = vld [vmem:[#allocation2 + $0x48] sm:$0xff]
    %v33 = vld [vmem:[#allocation2 + $0x50] sm:$0xff]
    %v34 = vld [vmem:[#allocation2 + $0x58] sm:$0xff]
    %v35 = vld [vmem:[#allocation2 + $0x60] sm:$0xff]
    %v36 = vld [vmem:[#allocation2 + $0x68] sm:$0xff]
    %v37 = vld [vmem:[#allocation2 + $0x70] sm:$0xff]
    %v38 = vld [vmem:[#allocation2 + $0x78] sm:$0xff]
    %v39 = vld [vmem:[#allocation2 + $0x80] sm:$0xff]
    %v40 = vld [vmem:[#allocation2 + $0x88] sm:$0xff]
    %v41 = vld [vmem:[#allocation2 + $0x90] sm:$0xff]
    %v42 = vld [vmem:[#allocation2 + $0x98] sm:$0xff]
    %v43 = vld [vmem:[#allocation2 + $0xa0] sm:$0xff]
    %v44 = vld [vmem:[#allocation2 + $0xa8] sm:$0xff]
    %v45 = vld [vmem:[#allocation2 + $0xb0] sm:$0xff]
    %v46 = vld [vmem:[#allocation2 + $0xb8] sm:$0xff]
    %v47 = vld [vmem:[#allocation2 + $0xc0] sm:$0xff]
    %v48 = vld [vmem:[#allocation2 + $0xc8] sm:$0xff]
    %v49 = vld [vmem:[#allocation2 + $0xd0] sm:$0xff]
    %v50 = vld [vmem:[#allocation2 + $0xd8] sm:$0xff]
    %v51 = vld [vmem:[#allocation2 + $0xe0] sm:$0xff]
    %v52 = vld [vmem:[#allocation2 + $0xe8] sm:$0xff]
    %v53 = vld [vmem:[#allocation2 + $0xf0] sm:$0xff]
    %v54 = vld [vmem:[#allocation2 + $0xf8] sm:$0xff]
    %v87 = vrot.slane %v23, 3
    %v88 = vrot.slane %v24, 3
    %v89 = vrot.slane %v25, 3
    %v90 = vrot.slane %v26, 3
    %v91 = vrot.slane %v27, 3
    %v92 = vrot.slane %v28, 3
    %v93 = vrot.slane %v29, 3
    %v94 = vrot.slane %v30, 3
    %v95 = vrot.slane %v31, 3
    %v96 = vrot.slane %v32, 3
    %v97 = vrot.slane %v33, 3
    %v98 = vrot.slane %v34, 3
    %v99 = vrot.slane %v35, 3
    %v100 = vrot.slane %v36, 3
    %v101 = vrot.slane %v37, 3
    %v102 = vrot.slane %v38, 3
    %v103 = vrot.slane %v39, 3
    %v104 = vrot.slane %v40, 3
    %v105 = vrot.slane %v41, 3
    %v106 = vrot.slane %v42, 3
    %v107 = vrot.slane %v43, 3
    %v108 = vrot.slane %v44, 3
    %v109 = vrot.slane %v45, 3
    %v110 = vrot.slane %v46, 3
    %v111 = vrot.slane %v47, 3
    %v112 = vrot.slane %v48, 3
    %v113 = vrot.slane %v49, 3
    %v114 = vrot.slane %v50, 3
    %v115 = vrot.slane %v51, 3
    %v116 = vrot.slane %v52, 3
    %v117 = vrot.slane %v53, 3
    %v118 = vrot.slane %v54, 3
    %v151 = vmul.f32 %v23, %v87
    %v152 = vmul.f32 %v24, %v88
    %v153 = vmul.f32 %v25, %v89
    %v154 = vmul.f32 %v26, %v90
    %v155 = vmul.f32 %v27, %v91
    %v156 = vmul.f32 %v28, %v92
    %v157 = vmul.f32 %v29, %v93
    %v158 = vmul.f32 %v30, %v94
    %v159 = vmul.f32 %v31, %v95
    %v160 = vmul.f32 %v32, %v96
    %v161 = vmul.f32 %v33, %v97
    %v162 = vmul.f32 %v34, %v98
    %v163 = vmul.f32 %v35, %v99
    %v164 = vmul.f32 %v36, %v100
    %v165 = vmul.f32 %v37, %v101
    %v166 = vmul.f32 %v38, %v102
    %v167 = vmul.f32 %v39, %v103
    %v168 = vmul.f32 %v40, %v104
    %v169 = vmul.f32 %v41, %v105
    %v170 = vmul.f32 %v42, %v106
    %v171 = vmul.f32 %v43, %v107
    %v172 = vmul.f32 %v44, %v108
    %v173 = vmul.f32 %v45, %v109
    %v174 = vmul.f32 %v46, %v110
    %v175 = vmul.f32 %v47, %v111
    %v176 = vmul.f32 %v48, %v112
    %v177 = vmul.f32 %v49, %v113
    %v178 = vmul.f32 %v50, %v114
    %v179 = vmul.f32 %v51, %v115
    %v180 = vmul.f32 %v52, %v116
    %v181 = vmul.f32 %v53, %v117
    %v182 = vmul.f32 %v54, %v118
    %v183 = vrot.slane %v23, 1
    %v184 = vrot.slane %v24, 1
    %v185 = vrot.slane %v25, 1
    %v186 = vrot.slane %v26, 1
    %v187 = vrot.slane %v27, 1
    %v188 = vrot.slane %v28, 1
    %v189 = vrot.slane %v29, 1
    %v190 = vrot.slane %v30, 1
    %v191 = vrot.slane %v31, 1
    %v192 = vrot.slane %v32, 1
    %v193 = vrot.slane %v33, 1
    %v194 = vrot.slane %v34, 1
    %v195 = vrot.slane %v35, 1
    %v196 = vrot.slane %v36, 1
    %v197 = vrot.slane %v37, 1
    %v198 = vrot.slane %v38, 1
    %v199 = vrot.slane %v39, 1
    %v200 = vrot.slane %v40, 1
    %v201 = vrot.slane %v41, 1
    %v202 = vrot.slane %v42, 1
    %v203 = vrot.slane %v43, 1
    %v204 = vrot.slane %v44, 1
    %v205 = vrot.slane %v45, 1
    %v206 = vrot.slane %v46, 1
    %v207 = vrot.slane %v47, 1
    %v208 = vrot.slane %v48, 1
    %v209 = vrot.slane %v49, 1
    %v210 = vrot.slane %v50, 1
    %v211 = vrot.slane %v51, 1
    %v212 = vrot.slane %v52, 1
    %v213 = vrot.slane %v53, 1
    %v214 = vrot.slane %v54, 1
    %v247 = vmul.f32 %v23, %v183
    %v248 = vmul.f32 %v24, %v184
    %v249 = vmul.f32 %v25, %v185
    %v250 = vmul.f32 %v26, %v186
    %v251 = vmul.f32 %v27, %v187
    %v252 = vmul.f32 %v28, %v188
    %v253 = vmul.f32 %v29, %v189
    %v254 = vmul.f32 %v30, %v190
    %v255 = vmul.f32 %v31, %v191
    %v256 = vmul.f32 %v32, %v192
    %v257 = vmul.f32 %v33, %v193
    %v258 = vmul.f32 %v34, %v194
    %v259 = vmul.f32 %v35, %v195
    %v260 = vmul.f32 %v36, %v196
    %v261 = vmul.f32 %v37, %v197
    %v262 = vmul.f32 %v38, %v198
    %v263 = vmul.f32 %v39, %v199
    %v264 = vmul.f32 %v40, %v200
    %v265 = vmul.f32 %v41, %v201
    %v266 = vmul.f32 %v42, %v202
    %v267 = vmul.f32 %v43, %v203
    %v268 = vmul.f32 %v44, %v204
    %v269 = vmul.f32 %v45, %v205
    %v270 = vmul.f32 %v46, %v206
    %v271 = vmul.f32 %v47, %v207
    %v272 = vmul.f32 %v48, %v208
    %v273 = vmul.f32 %v49, %v209
    %v274 = vmul.f32 %v50, %v210
    %v275 = vmul.f32 %v51, %v211
    %v276 = vmul.f32 %v52, %v212
    %v277 = vmul.f32 %v53, %v213
    %v278 = vmul.f32 %v54, %v214
    %v311 = vrot.slane %v247, 1
    %v312 = vrot.slane %v248, 1
    %v313 = vrot.slane %v249, 1
    %v314 = vrot.slane %v250, 1
    %v315 = vrot.slane %v251, 1
    %v316 = vrot.slane %v252, 1
    %v317 = vrot.slane %v253, 1
    %v318 = vrot.slane %v254, 1
    %v319 = vrot.slane %v255, 1
    %v320 = vrot.slane %v256, 1
    %v321 = vrot.slane %v257, 1
    %v322 = vrot.slane %v258, 1
    %v323 = vrot.slane %v259, 1
    %v324 = vrot.slane %v260, 1
    %v325 = vrot.slane %v261, 1
    %v326 = vrot.slane %v262, 1
    %v327 = vrot.slane %v263, 1
    %v328 = vrot.slane %v264, 1
    %v329 = vrot.slane %v265, 1
    %v330 = vrot.slane %v266, 1
    %v331 = vrot.slane %v267, 1
    %v332 = vrot.slane %v268, 1
    %v333 = vrot.slane %v269, 1
    %v334 = vrot.slane %v270, 1
    %v335 = vrot.slane %v271, 1
    %v336 = vrot.slane %v272, 1
    %v337 = vrot.slane %v273, 1
    %v338 = vrot.slane %v274, 1
    %v339 = vrot.slane %v275, 1
    %v340 = vrot.slane %v276, 1
    %v341 = vrot.slane %v277, 1
    %v342 = vrot.slane %v278, 1
    %v375 = vsub.f32 %v151, %v311
    %v376 = vsub.f32 %v152, %v312
    %v377 = vsub.f32 %v153, %v313
    %v378 = vsub.f32 %v154, %v314
    %v379 = vsub.f32 %v155, %v315
    %v380 = vsub.f32 %v156, %v316
    %v381 = vsub.f32 %v157, %v317
    %v382 = vsub.f32 %v158, %v318
    %v383 = vsub.f32 %v159, %v319
    %v384 = vsub.f32 %v160, %v320
    %v385 = vsub.f32 %v161, %v321
    %v386 = vsub.f32 %v162, %v322
    %v387 = vsub.f32 %v163, %v323
    %v388 = vsub.f32 %v164, %v324
    %v389 = vsub.f32 %v165, %v325
    %v390 = vsub.f32 %v166, %v326
    %v391 = vsub.f32 %v167, %v327
    %v392 = vsub.f32 %v168, %v328
    %v393 = vsub.f32 %v169, %v329
    %v394 = vsub.f32 %v170, %v330
    %v395 = vsub.f32 %v171, %v331
    %v396 = vsub.f32 %v172, %v332
    %v397 = vsub.f32 %v173, %v333
    %v398 = vsub.f32 %v174, %v334
    %v399 = vsub.f32 %v175, %v335
    %v400 = vsub.f32 %v176, %v336
    %v401 = vsub.f32 %v177, %v337
    %v402 = vsub.f32 %v178, %v338
    %v403 = vsub.f32 %v179, %v339
    %v404 = vsub.f32 %v180, %v340
    %v405 = vsub.f32 %v181, %v341
    %v406 = vsub.f32 %v182, %v342
    %v407 = vrcp.pop %v375
    %v408 = vmul.f32 %v375, %v407
    %v409 = vsub.f32 1.0, %v408
    %v410 = vmul.f32 %v407, %v409
    %v411 = vadd.f32 %v407, %v410
    %vm412 = vweird.f32 %v375
    %vm413 = vweird.f32 %v407
    %vm414 = vmor %vm412, %vm413
    %v415 = vsel %vm414, %v407, %v411
    %v416 = vand.u32 2147483647, %v375
    %vm417 = vcmp.eq.f32.partialorder %v416, 8.507059e+37
    %v418 = vand.u32 %v375, 2147483648
    %v419 = vor.u32 1.1754944e-38, %v418
    %v420 = vsel %vm417, %v419, %v415
    %v421 = vrcp.pop %v376
    %v422 = vmul.f32 %v376, %v421
    %v423 = vsub.f32 1.0, %v422
    %v424 = vmul.f32 %v421, %v423
    %v425 = vadd.f32 %v421, %v424
    %vm426 = vweird.f32 %v376
    %vm427 = vweird.f32 %v421
    %vm428 = vmor %vm426, %vm427
    %v429 = vsel %vm428, %v421, %v425
    %v430 = vand.u32 2147483647, %v376
    %vm431 = vcmp.eq.f32.partialorder %v430, 8.507059e+37
    %v432 = vand.u32 %v376, 2147483648
    %v433 = vor.u32 1.1754944e-38, %v432
    %v434 = vsel %vm431, %v433, %v429
    %v435 = vrcp.pop %v377
    %v436 = vmul.f32 %v377, %v435
    %v437 = vsub.f32 1.0, %v436
    %v438 = vmul.f32 %v435, %v437
    %v439 = vadd.f32 %v435, %v438
    %vm440 = vweird.f32 %v377
    %vm441 = vweird.f32 %v435
    %vm442 = vmor %vm440, %vm441
    %v443 = vsel %vm442, %v435, %v439
    %v444 = vand.u32 2147483647, %v377
    %vm445 = vcmp.eq.f32.partialorder %v444, 8.507059e+37
    %v446 = vand.u32 %v377, 2147483648
    %v447 = vor.u32 1.1754944e-38, %v446
    %v448 = vsel %vm445, %v447, %v443
    %v449 = vrcp.pop %v378
    %v450 = vmul.f32 %v378, %v449
    %v451 = vsub.f32 1.0, %v450
    %v452 = vmul.f32 %v449, %v451
    %v453 = vadd.f32 %v449, %v452
    %vm454 = vweird.f32 %v378
    %vm455 = vweird.f32 %v449
    %vm456 = vmor %vm454, %vm455
    %v457 = vsel %vm456, %v449, %v453
    %v458 = vand.u32 2147483647, %v378
    %vm459 = vcmp.eq.f32.partialorder %v458, 8.507059e+37
    %v460 = vand.u32 %v378, 2147483648
    %v461 = vor.u32 1.1754944e-38, %v460
    %v462 = vsel %vm459, %v461, %v457
    %v463 = vrcp.pop %v379
    %v464 = vmul.f32 %v379, %v463
    %v465 = vsub.f32 1.0, %v464
    %v466 = vmul.f32 %v463, %v465
    %v467 = vadd.f32 %v463, %v466
    %vm468 = vweird.f32 %v379
    %vm469 = vweird.f32 %v463
    %vm470 = vmor %vm468, %vm469
    %v471 = vsel %vm470, %v463, %v467
    %v472 = vand.u32 2147483647, %v379
    %vm473 = vcmp.eq.f32.partialorder %v472, 8.507059e+37
    %v474 = vand.u32 %v379, 2147483648
    %v475 = vor.u32 1.1754944e-38, %v474
    %v476 = vsel %vm473, %v475, %v471
    %v477 = vrcp.pop %v380
    %v478 = vmul.f32 %v380, %v477
    %v479 = vsub.f32 1.0, %v478
    %v480 = vmul.f32 %v477, %v479
    %v481 = vadd.f32 %v477, %v480
    %vm482 = vweird.f32 %v380
    %vm483 = vweird.f32 %v477
    %vm484 = vmor %vm482, %vm483
    %v485 = vsel %vm484, %v477, %v481
    %v486 = vand.u32 2147483647, %v380
    %vm487 = vcmp.eq.f32.partialorder %v486, 8.507059e+37
    %v488 = vand.u32 %v380, 2147483648
    %v489 = vor.u32 1.1754944e-38, %v488
    %v490 = vsel %vm487, %v489, %v485
    %v491 = vrcp.pop %v381
    %v492 = vmul.f32 %v381, %v491
    %v493 = vsub.f32 1.0, %v492
    %v494 = vmul.f32 %v491, %v493
    %v495 = vadd.f32 %v491, %v494
    %vm496 = vweird.f32 %v381
    %vm497 = vweird.f32 %v491
    %vm498 = vmor %vm496, %vm497
    %v499 = vsel %vm498, %v491, %v495
    %v500 = vand.u32 2147483647, %v381
    %vm501 = vcmp.eq.f32.partialorder %v500, 8.507059e+37
    %v502 = vand.u32 %v381, 2147483648
    %v503 = vor.u32 1.1754944e-38, %v502
    %v504 = vsel %vm501, %v503, %v499
    %v505 = vrcp.pop %v382
    %v506 = vmul.f32 %v382, %v505
    %v507 = vsub.f32 1.0, %v506
    %v508 = vmul.f32 %v505, %v507
    %v509 = vadd.f32 %v505, %v508
    %vm510 = vweird.f32 %v382
    %vm511 = vweird.f32 %v505
    %vm512 = vmor %vm510, %vm511
    %v513 = vsel %vm512, %v505, %v509
    %v514 = vand.u32 2147483647, %v382
    %vm515 = vcmp.eq.f32.partialorder %v514, 8.507059e+37
    %v516 = vand.u32 %v382, 2147483648
    %v517 = vor.u32 1.1754944e-38, %v516
    %v518 = vsel %vm515, %v517, %v513
    %v519 = vrcp.pop %v383
    %v520 = vmul.f32 %v383, %v519
    %v521 = vsub.f32 1.0, %v520
    %v522 = vmul.f32 %v519, %v521
    %v523 = vadd.f32 %v519, %v522
    %vm524 = vweird.f32 %v383
    %vm525 = vweird.f32 %v519
    %vm526 = vmor %vm524, %vm525
    %v527 = vsel %vm526, %v519, %v523
    %v528 = vand.u32 2147483647, %v383
    %vm529 = vcmp.eq.f32.partialorder %v528, 8.507059e+37
    %v530 = vand.u32 %v383, 2147483648
    %v531 = vor.u32 1.1754944e-38, %v530
    %v532 = vsel %vm529, %v531, %v527
    %v533 = vrcp.pop %v384
    %v534 = vmul.f32 %v384, %v533
    %v535 = vsub.f32 1.0, %v534
    %v536 = vmul.f32 %v533, %v535
    %v537 = vadd.f32 %v533, %v536
    %vm538 = vweird.f32 %v384
    %vm539 = vweird.f32 %v533
    %vm540 = vmor %vm538, %vm539
    %v541 = vsel %vm540, %v533, %v537
    %v542 = vand.u32 2147483647, %v384
    %vm543 = vcmp.eq.f32.partialorder %v542, 8.507059e+37
    %v544 = vand.u32 %v384, 2147483648
    %v545 = vor.u32 1.1754944e-38, %v544
    %v546 = vsel %vm543, %v545, %v541
    %v547 = vrcp.pop %v385
    %v548 = vmul.f32 %v385, %v547
    %v549 = vsub.f32 1.0, %v548
    %v550 = vmul.f32 %v547, %v549
    %v551 = vadd.f32 %v547, %v550
    %vm552 = vweird.f32 %v385
    %vm553 = vweird.f32 %v547
    %vm554 = vmor %vm552, %vm553
    %v555 = vsel %vm554, %v547, %v551
    %v556 = vand.u32 2147483647, %v385
    %vm557 = vcmp.eq.f32.partialorder %v556, 8.507059e+37
    %v558 = vand.u32 %v385, 2147483648
    %v559 = vor.u32 1.1754944e-38, %v558
    %v560 = vsel %vm557, %v559, %v555
    %v561 = vrcp.pop %v386
    %v562 = vmul.f32 %v386, %v561
    %v563 = vsub.f32 1.0, %v562
    %v564 = vmul.f32 %v561, %v563
    %v565 = vadd.f32 %v561, %v564
    %vm566 = vweird.f32 %v386
    %vm567 = vweird.f32 %v561
    %vm568 = vmor %vm566, %vm567
    %v569 = vsel %vm568, %v561, %v565
    %v570 = vand.u32 2147483647, %v386
    %vm571 = vcmp.eq.f32.partialorder %v570, 8.507059e+37
    %v572 = vand.u32 %v386, 2147483648
    %v573 = vor.u32 1.1754944e-38, %v572
    %v574 = vsel %vm571, %v573, %v569
    %v575 = vrcp.pop %v387
    %v576 = vmul.f32 %v387, %v575
    %v577 = vsub.f32 1.0, %v576
    %v578 = vmul.f32 %v575, %v577
    %v579 = vadd.f32 %v575, %v578
    %vm580 = vweird.f32 %v387
    %vm581 = vweird.f32 %v575
    %vm582 = vmor %vm580, %vm581
    %v583 = vsel %vm582, %v575, %v579
    %v584 = vand.u32 2147483647, %v387
    %vm585 = vcmp.eq.f32.partialorder %v584, 8.507059e+37
    %v586 = vand.u32 %v387, 2147483648
    %v587 = vor.u32 1.1754944e-38, %v586
    %v588 = vsel %vm585, %v587, %v583
    %v589 = vrcp.pop %v388
    %v590 = vmul.f32 %v388, %v589
    %v591 = vsub.f32 1.0, %v590
    %v592 = vmul.f32 %v589, %v591
    %v593 = vadd.f32 %v589, %v592
    %vm594 = vweird.f32 %v388
    %vm595 = vweird.f32 %v589
    %vm596 = vmor %vm594, %vm595
    %v597 = vsel %vm596, %v589, %v593
    %v598 = vand.u32 2147483647, %v388
    %vm599 = vcmp.eq.f32.partialorder %v598, 8.507059e+37
    %v600 = vand.u32 %v388, 2147483648
    %v601 = vor.u32 1.1754944e-38, %v600
    %v602 = vsel %vm599, %v601, %v597
    %v603 = vrcp.pop %v389
    %v604 = vmul.f32 %v389, %v603
    %v605 = vsub.f32 1.0, %v604
    %v606 = vmul.f32 %v603, %v605
    %v607 = vadd.f32 %v603, %v606
    %vm608 = vweird.f32 %v389
    %vm609 = vweird.f32 %v603
    %vm610 = vmor %vm608, %vm609
    %v611 = vsel %vm610, %v603, %v607
    %v612 = vand.u32 2147483647, %v389
    %vm613 = vcmp.eq.f32.partialorder %v612, 8.507059e+37
    %v614 = vand.u32 %v389, 2147483648
    %v615 = vor.u32 1.1754944e-38, %v614
    %v616 = vsel %vm613, %v615, %v611
    %v617 = vrcp.pop %v390
    %v618 = vmul.f32 %v390, %v617
    %v619 = vsub.f32 1.0, %v618
    %v620 = vmul.f32 %v617, %v619
    %v621 = vadd.f32 %v617, %v620
    %vm622 = vweird.f32 %v390
    %vm623 = vweird.f32 %v617
    %vm624 = vmor %vm622, %vm623
    %v625 = vsel %vm624, %v617, %v621
    %v626 = vand.u32 2147483647, %v390
    %vm627 = vcmp.eq.f32.partialorder %v626, 8.507059e+37
    %v628 = vand.u32 %v390, 2147483648
    %v629 = vor.u32 1.1754944e-38, %v628
    %v630 = vsel %vm627, %v629, %v625
    %v631 = vrcp.pop %v391
    %v632 = vmul.f32 %v391, %v631
    %v633 = vsub.f32 1.0, %v632
    %v634 = vmul.f32 %v631, %v633
    %v635 = vadd.f32 %v631, %v634
    %vm636 = vweird.f32 %v391
    %vm637 = vweird.f32 %v631
    %vm638 = vmor %vm636, %vm637
    %v639 = vsel %vm638, %v631, %v635
    %v640 = vand.u32 2147483647, %v391
    %vm641 = vcmp.eq.f32.partialorder %v640, 8.507059e+37
    %v642 = vand.u32 %v391, 2147483648
    %v643 = vor.u32 1.1754944e-38, %v642
    %v644 = vsel %vm641, %v643, %v639
    %v645 = vrcp.pop %v392
    %v646 = vmul.f32 %v392, %v645
    %v647 = vsub.f32 1.0, %v646
    %v648 = vmul.f32 %v645, %v647
    %v649 = vadd.f32 %v645, %v648
    %vm650 = vweird.f32 %v392
    %vm651 = vweird.f32 %v645
    %vm652 = vmor %vm650, %vm651
    %v653 = vsel %vm652, %v645, %v649
    %v654 = vand.u32 2147483647, %v392
    %vm655 = vcmp.eq.f32.partialorder %v654, 8.507059e+37
    %v656 = vand.u32 %v392, 2147483648
    %v657 = vor.u32 1.1754944e-38, %v656
    %v658 = vsel %vm655, %v657, %v653
    %v659 = vrcp.pop %v393
    %v660 = vmul.f32 %v393, %v659
    %v661 = vsub.f32 1.0, %v660
    %v662 = vmul.f32 %v659, %v661
    %v663 = vadd.f32 %v659, %v662
    %vm664 = vweird.f32 %v393
    %vm665 = vweird.f32 %v659
    %vm666 = vmor %vm664, %vm665
    %v667 = vsel %vm666, %v659, %v663
    %v668 = vand.u32 2147483647, %v393
    %vm669 = vcmp.eq.f32.partialorder %v668, 8.507059e+37
    %v670 = vand.u32 %v393, 2147483648
    %v671 = vor.u32 1.1754944e-38, %v670
    %v672 = vsel %vm669, %v671, %v667
    %v673 = vrcp.pop %v394
    %v674 = vmul.f32 %v394, %v673
    %v675 = vsub.f32 1.0, %v674
    %v676 = vmul.f32 %v673, %v675
    %v677 = vadd.f32 %v673, %v676
    %vm678 = vweird.f32 %v394
    %vm679 = vweird.f32 %v673
    %vm680 = vmor %vm678, %vm679
    %v681 = vsel %vm680, %v673, %v677
    %v682 = vand.u32 2147483647, %v394
    %vm683 = vcmp.eq.f32.partialorder %v682, 8.507059e+37
    %v684 = vand.u32 %v394, 2147483648
    %v685 = vor.u32 1.1754944e-38, %v684
    %v686 = vsel %vm683, %v685, %v681
    %v687 = vrcp.pop %v395
    %v688 = vmul.f32 %v395, %v687
    %v689 = vsub.f32 1.0, %v688
    %v690 = vmul.f32 %v687, %v689
    %v691 = vadd.f32 %v687, %v690
    %vm692 = vweird.f32 %v395
    %vm693 = vweird.f32 %v687
    %vm694 = vmor %vm692, %vm693
    %v695 = vsel %vm694, %v687, %v691
    %v696 = vand.u32 2147483647, %v395
    %vm697 = vcmp.eq.f32.partialorder %v696, 8.507059e+37
    %v698 = vand.u32 %v395, 2147483648
    %v699 = vor.u32 1.1754944e-38, %v698
    %v700 = vsel %vm697, %v699, %v695
    %v701 = vrcp.pop %v396
    %v702 = vmul.f32 %v396, %v701
    %v703 = vsub.f32 1.0, %v702
    %v704 = vmul.f32 %v701, %v703
    %v705 = vadd.f32 %v701, %v704
    %vm706 = vweird.f32 %v396
    %vm707 = vweird.f32 %v701
    %vm708 = vmor %vm706, %vm707
    %v709 = vsel %vm708, %v701, %v705
    %v710 = vand.u32 2147483647, %v396
    %vm711 = vcmp.eq.f32.partialorder %v710, 8.507059e+37
    %v712 = vand.u32 %v396, 2147483648
    %v713 = vor.u32 1.1754944e-38, %v712
    %v714 = vsel %vm711, %v713, %v709
    %v715 = vrcp.pop %v397
    %v716 = vmul.f32 %v397, %v715
    %v717 = vsub.f32 1.0, %v716
    %v718 = vmul.f32 %v715, %v717
    %v719 = vadd.f32 %v715, %v718
    %vm720 = vweird.f32 %v397
    %vm721 = vweird.f32 %v715
    %vm722 = vmor %vm720, %vm721
    %v723 = vsel %vm722, %v715, %v719
    %v724 = vand.u32 2147483647, %v397
    %vm725 = vcmp.eq.f32.partialorder %v724, 8.507059e+37
    %v726 = vand.u32 %v397, 2147483648
    %v727 = vor.u32 1.1754944e-38, %v726
    %v728 = vsel %vm725, %v727, %v723
    %v729 = vrcp.pop %v398
    %v730 = vmul.f32 %v398, %v729
    %v731 = vsub.f32 1.0, %v730
    %v732 = vmul.f32 %v729, %v731
    %v733 = vadd.f32 %v729, %v732
    %vm734 = vweird.f32 %v398
    %vm735 = vweird.f32 %v729
    %vm736 = vmor %vm734, %vm735
    %v737 = vsel %vm736, %v729, %v733
    %v738 = vand.u32 2147483647, %v398
    %vm739 = vcmp.eq.f32.partialorder %v738, 8.507059e+37
    %v740 = vand.u32 %v398, 2147483648
    %v741 = vor.u32 1.1754944e-38, %v740
    %v742 = vsel %vm739, %v741, %v737
    %v743 = vrcp.pop %v399
    %v744 = vmul.f32 %v399, %v743
    %v745 = vsub.f32 1.0, %v744
    %v746 = vmul.f32 %v743, %v745
    %v747 = vadd.f32 %v743, %v746
    %vm748 = vweird.f32 %v399
    %vm749 = vweird.f32 %v743
    %vm750 = vmor %vm748, %vm749
    %v751 = vsel %vm750, %v743, %v747
    %v752 = vand.u32 2147483647, %v399
    %vm753 = vcmp.eq.f32.partialorder %v752, 8.507059e+37
    %v754 = vand.u32 %v399, 2147483648
    %v755 = vor.u32 1.1754944e-38, %v754
    %v756 = vsel %vm753, %v755, %v751
    %v757 = vrcp.pop %v400
    %v758 = vmul.f32 %v400, %v757
    %v759 = vsub.f32 1.0, %v758
    %v760 = vmul.f32 %v757, %v759
    %v761 = vadd.f32 %v757, %v760
    %vm762 = vweird.f32 %v400
    %vm763 = vweird.f32 %v757
    %vm764 = vmor %vm762, %vm763
    %v765 = vsel %vm764, %v757, %v761
    %v766 = vand.u32 2147483647, %v400
    %vm767 = vcmp.eq.f32.partialorder %v766, 8.507059e+37
    %v768 = vand.u32 %v400, 2147483648
    %v769 = vor.u32 1.1754944e-38, %v768
    %v770 = vsel %vm767, %v769, %v765
    %v771 = vrcp.pop %v401
    %v772 = vmul.f32 %v401, %v771
    %v773 = vsub.f32 1.0, %v772
    %v774 = vmul.f32 %v771, %v773
    %v775 = vadd.f32 %v771, %v774
    %vm776 = vweird.f32 %v401
    %vm777 = vweird.f32 %v771
    %vm778 = vmor %vm776, %vm777
    %v779 = vsel %vm778, %v771, %v775
    %v780 = vand.u32 2147483647, %v401
    %vm781 = vcmp.eq.f32.partialorder %v780, 8.507059e+37
    %v782 = vand.u32 %v401, 2147483648
    %v783 = vor.u32 1.1754944e-38, %v782
    %v784 = vsel %vm781, %v783, %v779
    %v785 = vrcp.pop %v402
    %v786 = vmul.f32 %v402, %v785
    %v787 = vsub.f32 1.0, %v786
    %v788 = vmul.f32 %v785, %v787
    %v789 = vadd.f32 %v785, %v788
    %vm790 = vweird.f32 %v402
    %vm791 = vweird.f32 %v785
    %vm792 = vmor %vm790, %vm791
    %v793 = vsel %vm792, %v785, %v789
    %v794 = vand.u32 2147483647, %v402
    %vm795 = vcmp.eq.f32.partialorder %v794, 8.507059e+37
    %v796 = vand.u32 %v402, 2147483648
    %v797 = vor.u32 1.1754944e-38, %v796
    %v798 = vsel %vm795, %v797, %v793
    %v799 = vrcp.pop %v403
    %v800 = vmul.f32 %v403, %v799
    %v801 = vsub.f32 1.0, %v800
    %v802 = vmul.f32 %v799, %v801
    %v803 = vadd.f32 %v799, %v802
    %vm804 = vweird.f32 %v403
    %vm805 = vweird.f32 %v799
    %vm806 = vmor %vm804, %vm805
    %v807 = vsel %vm806, %v799, %v803
    %v808 = vand.u32 2147483647, %v403
    %vm809 = vcmp.eq.f32.partialorder %v808, 8.507059e+37
    %v810 = vand.u32 %v403, 2147483648
    %v811 = vor.u32 1.1754944e-38, %v810
    %v812 = vsel %vm809, %v811, %v807
    %v813 = vrcp.pop %v404
    %v814 = vmul.f32 %v404, %v813
    %v815 = vsub.f32 1.0, %v814
    %v816 = vmul.f32 %v813, %v815
    %v817 = vadd.f32 %v813, %v816
    %vm818 = vweird.f32 %v404
    %vm819 = vweird.f32 %v813
    %vm820 = vmor %vm818, %vm819
    %v821 = vsel %vm820, %v813, %v817
    %v822 = vand.u32 2147483647, %v404
    %vm823 = vcmp.eq.f32.partialorder %v822, 8.507059e+37
    %v824 = vand.u32 %v404, 2147483648
    %v825 = vor.u32 1.1754944e-38, %v824
    %v826 = vsel %vm823, %v825, %v821
    %v827 = vrcp.pop %v405
    %v828 = vmul.f32 %v405, %v827
    %v829 = vsub.f32 1.0, %v828
    %v830 = vmul.f32 %v827, %v829
    %v831 = vadd.f32 %v827, %v830
    %vm832 = vweird.f32 %v405
    %vm833 = vweird.f32 %v827
    %vm834 = vmor %vm832, %vm833
    %v835 = vsel %vm834, %v827, %v831
    %v836 = vand.u32 2147483647, %v405
    %vm837 = vcmp.eq.f32.partialorder %v836, 8.507059e+37
    %v838 = vand.u32 %v405, 2147483648
    %v839 = vor.u32 1.1754944e-38, %v838
    %v840 = vsel %vm837, %v839, %v835
    %v841 = vrcp.pop %v406
    %v842 = vmul.f32 %v406, %v841
    %v843 = vsub.f32 1.0, %v842
    %v844 = vmul.f32 %v841, %v843
    %v845 = vadd.f32 %v841, %v844
    %vm846 = vweird.f32 %v406
    %vm847 = vweird.f32 %v841
    %vm848 = vmor %vm846, %vm847
    %v849 = vsel %vm848, %v841, %v845
    %v850 = vand.u32 2147483647, %v406
    %vm851 = vcmp.eq.f32.partialorder %v850, 8.507059e+37
    %v852 = vand.u32 %v406, 2147483648
    %v853 = vor.u32 1.1754944e-38, %v852
    %v854 = vsel %vm851, %v853, %v849
    %v855 = vsub.f32 0.0, %v420
    %v856 = vsub.f32 0.0, %v434
    %v857 = vsub.f32 0.0, %v448
    %v858 = vsub.f32 0.0, %v462
    %v859 = vsub.f32 0.0, %v476
    %v860 = vsub.f32 0.0, %v490
    %v861 = vsub.f32 0.0, %v504
    %v862 = vsub.f32 0.0, %v518
    %v863 = vsub.f32 0.0, %v532
    %v864 = vsub.f32 0.0, %v546
    %v865 = vsub.f32 0.0, %v560
    %v866 = vsub.f32 0.0, %v574
    %v867 = vsub.f32 0.0, %v588
    %v868 = vsub.f32 0.0, %v602
    %v869 = vsub.f32 0.0, %v616
    %v870 = vsub.f32 0.0, %v630
    %v871 = vsub.f32 0.0, %v644
    %v872 = vsub.f32 0.0, %v658
    %v873 = vsub.f32 0.0, %v672
    %v874 = vsub.f32 0.0, %v686
    %v875 = vsub.f32 0.0, %v700
    %v876 = vsub.f32 0.0, %v714
    %v877 = vsub.f32 0.0, %v728
    %v878 = vsub.f32 0.0, %v742
    %v879 = vsub.f32 0.0, %v756
    %v880 = vsub.f32 0.0, %v770
    %v881 = vsub.f32 0.0, %v784
    %v882 = vsub.f32 0.0, %v798
    %v883 = vsub.f32 0.0, %v812
    %v884 = vsub.f32 0.0, %v826
    %v885 = vsub.f32 0.0, %v840
    %v886 = vsub.f32 0.0, %v854
    %v919 = vrot.slane %v420, 5
    %v920 = vrot.slane %v434, 5
    %v921 = vrot.slane %v448, 5
    %v922 = vrot.slane %v462, 5
    %v923 = vrot.slane %v476, 5
    %v924 = vrot.slane %v490, 5
    %v925 = vrot.slane %v504, 5
    %v926 = vrot.slane %v518, 5
    %v927 = vrot.slane %v532, 5
    %v928 = vrot.slane %v546, 5
    %v929 = vrot.slane %v560, 5
    %v930 = vrot.slane %v574, 5
    %v931 = vrot.slane %v588, 5
    %v932 = vrot.slane %v602, 5
    %v933 = vrot.slane %v616, 5
    %v934 = vrot.slane %v630, 5
    %v935 = vrot.slane %v644, 5
    %v936 = vrot.slane %v658, 5
    %v937 = vrot.slane %v672, 5
    %v938 = vrot.slane %v686, 5
    %v939 = vrot.slane %v700, 5
    %v940 = vrot.slane %v714, 5
    %v941 = vrot.slane %v728, 5
    %v942 = vrot.slane %v742, 5
    %v943 = vrot.slane %v756, 5
    %v944 = vrot.slane %v770, 5
    %v945 = vrot.slane %v784, 5
    %v946 = vrot.slane %v798, 5
    %v947 = vrot.slane %v812, 5
    %v948 = vrot.slane %v826, 5
    %v949 = vrot.slane %v840, 5
    %v950 = vrot.slane %v854, 5
    %v983 = vmul.f32 %v23, %v919
    %v984 = vmul.f32 %v24, %v920
    %v985 = vmul.f32 %v25, %v921
    %v986 = vmul.f32 %v26, %v922
    %v987 = vmul.f32 %v27, %v923
    %v988 = vmul.f32 %v28, %v924
    %v989 = vmul.f32 %v29, %v925
    %v990 = vmul.f32 %v30, %v926
    %v991 = vmul.f32 %v31, %v927
    %v992 = vmul.f32 %v32, %v928
    %v993 = vmul.f32 %v33, %v929
    %v994 = vmul.f32 %v34, %v930
    %v995 = vmul.f32 %v35, %v931
    %v996 = vmul.f32 %v36, %v932
    %v997 = vmul.f32 %v37, %v933
    %v998 = vmul.f32 %v38, %v934
    %v999 = vmul.f32 %v39, %v935
    %v1000 = vmul.f32 %v40, %v936
    %v1001 = vmul.f32 %v41, %v937
    %v1002 = vmul.f32 %v42, %v938
    %v1003 = vmul.f32 %v43, %v939
    %v1004 = vmul.f32 %v44, %v940
    %v1005 = vmul.f32 %v45, %v941
    %v1006 = vmul.f32 %v46, %v942
    %v1007 = vmul.f32 %v47, %v943
    %v1008 = vmul.f32 %v48, %v944
    %v1009 = vmul.f32 %v49, %v945
    %v1010 = vmul.f32 %v50, %v946
    %v1011 = vmul.f32 %v51, %v947
    %v1012 = vmul.f32 %v52, %v948
    %v1013 = vmul.f32 %v53, %v949
    %v1014 = vmul.f32 %v54, %v950
    %v1047 = vrot.slane %v855, 7
    %v1048 = vrot.slane %v856, 7
    %v1049 = vrot.slane %v857, 7
    %v1050 = vrot.slane %v858, 7
    %v1051 = vrot.slane %v859, 7
    %v1052 = vrot.slane %v860, 7
    %v1053 = vrot.slane %v861, 7
    %v1054 = vrot.slane %v862, 7
    %v1055 = vrot.slane %v863, 7
    %v1056 = vrot.slane %v864, 7
    %v1057 = vrot.slane %v865, 7
    %v1058 = vrot.slane %v866, 7
    %v1059 = vrot.slane %v867, 7
    %v1060 = vrot.slane %v868, 7
    %v1061 = vrot.slane %v869, 7
    %v1062 = vrot.slane %v870, 7
    %v1063 = vrot.slane %v871, 7
    %v1064 = vrot.slane %v872, 7
    %v1065 = vrot.slane %v873, 7
    %v1066 = vrot.slane %v874, 7
    %v1067 = vrot.slane %v875, 7
    %v1068 = vrot.slane %v876, 7
    %v1069 = vrot.slane %v877, 7
    %v1070 = vrot.slane %v878, 7
    %v1071 = vrot.slane %v879, 7
    %v1072 = vrot.slane %v880, 7
    %v1073 = vrot.slane %v881, 7
    %v1074 = vrot.slane %v882, 7
    %v1075 = vrot.slane %v883, 7
    %v1076 = vrot.slane %v884, 7
    %v1077 = vrot.slane %v885, 7
    %v1078 = vrot.slane %v886, 7
    %v1111 = vmul.f32 %v23, %v1047
    %v1112 = vmul.f32 %v24, %v1048
    %v1113 = vmul.f32 %v25, %v1049
    %v1114 = vmul.f32 %v26, %v1050
    %v1115 = vmul.f32 %v27, %v1051
    %v1116 = vmul.f32 %v28, %v1052
    %v1117 = vmul.f32 %v29, %v1053
    %v1118 = vmul.f32 %v30, %v1054
    %v1119 = vmul.f32 %v31, %v1055
    %v1120 = vmul.f32 %v32, %v1056
    %v1121 = vmul.f32 %v33, %v1057
    %v1122 = vmul.f32 %v34, %v1058
    %v1123 = vmul.f32 %v35, %v1059
    %v1124 = vmul.f32 %v36, %v1060
    %v1125 = vmul.f32 %v37, %v1061
    %v1126 = vmul.f32 %v38, %v1062
    %v1127 = vmul.f32 %v39, %v1063
    %v1128 = vmul.f32 %v40, %v1064
    %v1129 = vmul.f32 %v41, %v1065
    %v1130 = vmul.f32 %v42, %v1066
    %v1131 = vmul.f32 %v43, %v1067
    %v1132 = vmul.f32 %v44, %v1068
    %v1133 = vmul.f32 %v45, %v1069
    %v1134 = vmul.f32 %v46, %v1070
    %v1135 = vmul.f32 %v47, %v1071
    %v1136 = vmul.f32 %v48, %v1072
    %v1137 = vmul.f32 %v49, %v1073
    %v1138 = vmul.f32 %v50, %v1074
    %v1139 = vmul.f32 %v51, %v1075
    %v1140 = vmul.f32 %v52, %v1076
    %v1141 = vmul.f32 %v53, %v1077
    %v1142 = vmul.f32 %v54, %v1078
    %v1143 = vrot.slane %v855, 6
    %v1144 = vrot.slane %v856, 6
    %v1145 = vrot.slane %v857, 6
    %v1146 = vrot.slane %v858, 6
    %v1147 = vrot.slane %v859, 6
    %v1148 = vrot.slane %v860, 6
    %v1149 = vrot.slane %v861, 6
    %v1150 = vrot.slane %v862, 6
    %v1151 = vrot.slane %v863, 6
    %v1152 = vrot.slane %v864, 6
    %v1153 = vrot.slane %v865, 6
    %v1154 = vrot.slane %v866, 6
    %v1155 = vrot.slane %v867, 6
    %v1156 = vrot.slane %v868, 6
    %v1157 = vrot.slane %v869, 6
    %v1158 = vrot.slane %v870, 6
    %v1159 = vrot.slane %v871, 6
    %v1160 = vrot.slane %v872, 6
    %v1161 = vrot.slane %v873, 6
    %v1162 = vrot.slane %v874, 6
    %v1163 = vrot.slane %v875, 6
    %v1164 = vrot.slane %v876, 6
    %v1165 = vrot.slane %v877, 6
    %v1166 = vrot.slane %v878, 6
    %v1167 = vrot.slane %v879, 6
    %v1168 = vrot.slane %v880, 6
    %v1169 = vrot.slane %v881, 6
    %v1170 = vrot.slane %v882, 6
    %v1171 = vrot.slane %v883, 6
    %v1172 = vrot.slane %v884, 6
    %v1173 = vrot.slane %v885, 6
    %v1174 = vrot.slane %v886, 6
    %v1207 = vmul.f32 %v23, %v1143
    %v1208 = vmul.f32 %v24, %v1144
    %v1209 = vmul.f32 %v25, %v1145
    %v1210 = vmul.f32 %v26, %v1146
    %v1211 = vmul.f32 %v27, %v1147
    %v1212 = vmul.f32 %v28, %v1148
    %v1213 = vmul.f32 %v29, %v1149
    %v1214 = vmul.f32 %v30, %v1150
    %v1215 = vmul.f32 %v31, %v1151
    %v1216 = vmul.f32 %v32, %v1152
    %v1217 = vmul.f32 %v33, %v1153
    %v1218 = vmul.f32 %v34, %v1154
    %v1219 = vmul.f32 %v35, %v1155
    %v1220 = vmul.f32 %v36, %v1156
    %v1221 = vmul.f32 %v37, %v1157
    %v1222 = vmul.f32 %v38, %v1158
    %v1223 = vmul.f32 %v39, %v1159
    %v1224 = vmul.f32 %v40, %v1160
    %v1225 = vmul.f32 %v41, %v1161
    %v1226 = vmul.f32 %v42, %v1162
    %v1227 = vmul.f32 %v43, %v1163
    %v1228 = vmul.f32 %v44, %v1164
    %v1229 = vmul.f32 %v45, %v1165
    %v1230 = vmul.f32 %v46, %v1166
    %v1231 = vmul.f32 %v47, %v1167
    %v1232 = vmul.f32 %v48, %v1168
    %v1233 = vmul.f32 %v49, %v1169
    %v1234 = vmul.f32 %v50, %v1170
    %v1235 = vmul.f32 %v51, %v1171
    %v1236 = vmul.f32 %v52, %v1172
    %v1237 = vmul.f32 %v53, %v1173
    %v1238 = vmul.f32 %v54, %v1174
    %v1239 = vmul.f32 %v23, %v420
    %v1240 = vmul.f32 %v24, %v434
    %v1241 = vmul.f32 %v25, %v448
    %v1242 = vmul.f32 %v26, %v462
    %v1243 = vmul.f32 %v27, %v476
    %v1244 = vmul.f32 %v28, %v490
    %v1245 = vmul.f32 %v29, %v504
    %v1246 = vmul.f32 %v30, %v518
    %v1247 = vmul.f32 %v31, %v532
    %v1248 = vmul.f32 %v32, %v546
    %v1249 = vmul.f32 %v33, %v560
    %v1250 = vmul.f32 %v34, %v574
    %v1251 = vmul.f32 %v35, %v588
    %v1252 = vmul.f32 %v36, %v602
    %v1253 = vmul.f32 %v37, %v616
    %v1254 = vmul.f32 %v38, %v630
    %v1255 = vmul.f32 %v39, %v644
    %v1256 = vmul.f32 %v40, %v658
    %v1257 = vmul.f32 %v41, %v672
    %v1258 = vmul.f32 %v42, %v686
    %v1259 = vmul.f32 %v43, %v700
    %v1260 = vmul.f32 %v44, %v714
    %v1261 = vmul.f32 %v45, %v728
    %v1262 = vmul.f32 %v46, %v742
    %v1263 = vmul.f32 %v47, %v756
    %v1264 = vmul.f32 %v48, %v770
    %v1265 = vmul.f32 %v49, %v784
    %v1266 = vmul.f32 %v50, %v798
    %v1267 = vmul.f32 %v51, %v812
    %v1268 = vmul.f32 %v52, %v826
    %v1269 = vmul.f32 %v53, %v840
    %v1270 = vmul.f32 %v54, %v854
    %v1303 = vrot.slane %v983, 3
    %v1304 = vrot.slane %v984, 3
    %v1305 = vrot.slane %v985, 3
    %v1306 = vrot.slane %v986, 3
    %v1307 = vrot.slane %v987, 3
    %v1308 = vrot.slane %v988, 3
    %v1309 = vrot.slane %v989, 3
    %v1310 = vrot.slane %v990, 3
    %v1311 = vrot.slane %v991, 3
    %v1312 = vrot.slane %v992, 3
    %v1313 = vrot.slane %v993, 3
    %v1314 = vrot.slane %v994, 3
    %v1315 = vrot.slane %v995, 3
    %v1316 = vrot.slane %v996, 3
    %v1317 = vrot.slane %v997, 3
    %v1318 = vrot.slane %v998, 3
    %v1319 = vrot.slane %v999, 3
    %v1320 = vrot.slane %v1000, 3
    %v1321 = vrot.slane %v1001, 3
    %v1322 = vrot.slane %v1002, 3
    %v1323 = vrot.slane %v1003, 3
    %v1324 = vrot.slane %v1004, 3
    %v1325 = vrot.slane %v1005, 3
    %v1326 = vrot.slane %v1006, 3
    %v1327 = vrot.slane %v1007, 3
    %v1328 = vrot.slane %v1008, 3
    %v1329 = vrot.slane %v1009, 3
    %v1330 = vrot.slane %v1010, 3
    %v1331 = vrot.slane %v1011, 3
    %v1332 = vrot.slane %v1012, 3
    %v1333 = vrot.slane %v1013, 3
    %v1334 = vrot.slane %v1014, 3
    %v1399 = vrot.slane %v1239, 5
    %v1400 = vrot.slane %v1240, 5
    %v1401 = vrot.slane %v1241, 5
    %v1402 = vrot.slane %v1242, 5
    %v1403 = vrot.slane %v1243, 5
    %v1404 = vrot.slane %v1244, 5
    %v1405 = vrot.slane %v1245, 5
    %v1406 = vrot.slane %v1246, 5
    %v1407 = vrot.slane %v1247, 5
    %v1408 = vrot.slane %v1248, 5
    %v1409 = vrot.slane %v1249, 5
    %v1410 = vrot.slane %v1250, 5
    %v1411 = vrot.slane %v1251, 5
    %v1412 = vrot.slane %v1252, 5
    %v1413 = vrot.slane %v1253, 5
    %v1414 = vrot.slane %v1254, 5
    %v1415 = vrot.slane %v1255, 5
    %v1416 = vrot.slane %v1256, 5
    %v1417 = vrot.slane %v1257, 5
    %v1418 = vrot.slane %v1258, 5
    %v1419 = vrot.slane %v1259, 5
    %v1420 = vrot.slane %v1260, 5
    %v1421 = vrot.slane %v1261, 5
    %v1422 = vrot.slane %v1262, 5
    %v1423 = vrot.slane %v1263, 5
    %v1424 = vrot.slane %v1264, 5
    %v1425 = vrot.slane %v1265, 5
    %v1426 = vrot.slane %v1266, 5
    %v1427 = vrot.slane %v1267, 5
    %v1428 = vrot.slane %v1268, 5
    %v1429 = vrot.slane %v1269, 5
    %v1430 = vrot.slane %v1270, 5
    %vm1463 = vcmask 1040384
    %v1464 = vsel %vm1463, %v1303, %v1111
    %v1465 = vsel %vm1463, %v1304, %v1112
    %v1466 = vsel %vm1463, %v1305, %v1113
    %v1467 = vsel %vm1463, %v1306, %v1114
    %v1468 = vsel %vm1463, %v1307, %v1115
    %v1469 = vsel %vm1463, %v1308, %v1116
    %v1470 = vsel %vm1463, %v1309, %v1117
    %v1471 = vsel %vm1463, %v1310, %v1118
    %v1472 = vsel %vm1463, %v1311, %v1119
    %v1473 = vsel %vm1463, %v1312, %v1120
    %v1474 = vsel %vm1463, %v1313, %v1121
    %v1475 = vsel %vm1463, %v1314, %v1122
    %v1476 = vsel %vm1463, %v1315, %v1123
    %v1477 = vsel %vm1463, %v1316, %v1124
    %v1478 = vsel %vm1463, %v1317, %v1125
    %v1479 = vsel %vm1463, %v1318, %v1126
    %v1480 = vsel %vm1463, %v1319, %v1127
    %v1481 = vsel %vm1463, %v1320, %v1128
    %v1482 = vsel %vm1463, %v1321, %v1129
    %v1483 = vsel %vm1463, %v1322, %v1130
    %v1484 = vsel %vm1463, %v1323, %v1131
    %v1485 = vsel %vm1463, %v1324, %v1132
    %v1486 = vsel %vm1463, %v1325, %v1133
    %v1487 = vsel %vm1463, %v1326, %v1134
    %v1488 = vsel %vm1463, %v1327, %v1135
    %v1489 = vsel %vm1463, %v1328, %v1136
    %v1490 = vsel %vm1463, %v1329, %v1137
    %v1491 = vsel %vm1463, %v1330, %v1138
    %v1492 = vsel %vm1463, %v1331, %v1139
    %v1493 = vsel %vm1463, %v1332, %v1140
    %v1494 = vsel %vm1463, %v1333, %v1141
    %v1495 = vsel %vm1463, %v1334, %v1142
    %vm1496 = vcmask 1041408
    %v1497 = vsel %vm1496, %v1464, %v1207
    %v1498 = vsel %vm1496, %v1465, %v1208
    %v1499 = vsel %vm1496, %v1466, %v1209
    %v1500 = vsel %vm1496, %v1467, %v1210
    %v1501 = vsel %vm1496, %v1468, %v1211
    %v1502 = vsel %vm1496, %v1469, %v1212
    %v1503 = vsel %vm1496, %v1470, %v1213
    %v1504 = vsel %vm1496, %v1471, %v1214
    %v1505 = vsel %vm1496, %v1472, %v1215
    %v1506 = vsel %vm1496, %v1473, %v1216
    %v1507 = vsel %vm1496, %v1474, %v1217
    %v1508 = vsel %vm1496, %v1475, %v1218
    %v1509 = vsel %vm1496, %v1476, %v1219
    %v1510 = vsel %vm1496, %v1477, %v1220
    %v1511 = vsel %vm1496, %v1478, %v1221
    %v1512 = vsel %vm1496, %v1479, %v1222
    %v1513 = vsel %vm1496, %v1480, %v1223
    %v1514 = vsel %vm1496, %v1481, %v1224
    %v1515 = vsel %vm1496, %v1482, %v1225
    %v1516 = vsel %vm1496, %v1483, %v1226
    %v1517 = vsel %vm1496, %v1484, %v1227
    %v1518 = vsel %vm1496, %v1485, %v1228
    %v1519 = vsel %vm1496, %v1486, %v1229
    %v1520 = vsel %vm1496, %v1487, %v1230
    %v1521 = vsel %vm1496, %v1488, %v1231
    %v1522 = vsel %vm1496, %v1489, %v1232
    %v1523 = vsel %vm1496, %v1490, %v1233
    %v1524 = vsel %vm1496, %v1491, %v1234
    %v1525 = vsel %vm1496, %v1492, %v1235
    %v1526 = vsel %vm1496, %v1493, %v1236
    %v1527 = vsel %vm1496, %v1494, %v1237
    %v1528 = vsel %vm1496, %v1495, %v1238
    %vm1529 = vcmask 1042432
    %v1530 = vsel %vm1529, %v1497, %v1399
    %v1531 = vsel %vm1529, %v1498, %v1400
    %v1532 = vsel %vm1529, %v1499, %v1401
    %v1533 = vsel %vm1529, %v1500, %v1402
    %v1534 = vsel %vm1529, %v1501, %v1403
    %v1535 = vsel %vm1529, %v1502, %v1404
    %v1536 = vsel %vm1529, %v1503, %v1405
    %v1537 = vsel %vm1529, %v1504, %v1406
    %v1538 = vsel %vm1529, %v1505, %v1407
    %v1539 = vsel %vm1529, %v1506, %v1408
    %v1540 = vsel %vm1529, %v1507, %v1409
    %v1541 = vsel %vm1529, %v1508, %v1410
    %v1542 = vsel %vm1529, %v1509, %v1411
    %v1543 = vsel %vm1529, %v1510, %v1412
    %v1544 = vsel %vm1529, %v1511, %v1413
    %v1545 = vsel %vm1529, %v1512, %v1414
    %v1546 = vsel %vm1529, %v1513, %v1415
    %v1547 = vsel %vm1529, %v1514, %v1416
    %v1548 = vsel %vm1529, %v1515, %v1417
    %v1549 = vsel %vm1529, %v1516, %v1418
    %v1550 = vsel %vm1529, %v1517, %v1419
    %v1551 = vsel %vm1529, %v1518, %v1420
    %v1552 = vsel %vm1529, %v1519, %v1421
    %v1553 = vsel %vm1529, %v1520, %v1422
    %v1554 = vsel %vm1529, %v1521, %v1423
    %v1555 = vsel %vm1529, %v1522, %v1424
    %v1556 = vsel %vm1529, %v1523, %v1425
    %v1557 = vsel %vm1529, %v1524, %v1426
    %v1558 = vsel %vm1529, %v1525, %v1427
    %v1559 = vsel %vm1529, %v1526, %v1428
    %v1560 = vsel %vm1529, %v1527, %v1429
    %v1561 = vsel %vm1529, %v1528, %v1430
    %vm1562 = vcmask 1043456
    %v1563 = vsel %vm1562, %v1530, %v1303
    %v1564 = vsel %vm1562, %v1531, %v1304
    %v1565 = vsel %vm1562, %v1532, %v1305
    %v1566 = vsel %vm1562, %v1533, %v1306
    %v1567 = vsel %vm1562, %v1534, %v1307
    %v1568 = vsel %vm1562, %v1535, %v1308
    %v1569 = vsel %vm1562, %v1536, %v1309
    %v1570 = vsel %vm1562, %v1537, %v1310
    %v1571 = vsel %vm1562, %v1538, %v1311
    %v1572 = vsel %vm1562, %v1539, %v1312
    %v1573 = vsel %vm1562, %v1540, %v1313
    %v1574 = vsel %vm1562, %v1541, %v1314
    %v1575 = vsel %vm1562, %v1542, %v1315
    %v1576 = vsel %vm1562, %v1543, %v1316
    %v1577 = vsel %vm1562, %v1544, %v1317
    %v1578 = vsel %vm1562, %v1545, %v1318
    %v1579 = vsel %vm1562, %v1546, %v1319
    %v1580 = vsel %vm1562, %v1547, %v1320
    %v1581 = vsel %vm1562, %v1548, %v1321
    %v1582 = vsel %vm1562, %v1549, %v1322
    %v1583 = vsel %vm1562, %v1550, %v1323
    %v1584 = vsel %vm1562, %v1551, %v1324
    %v1585 = vsel %vm1562, %v1552, %v1325
    %v1586 = vsel %vm1562, %v1553, %v1326
    %v1587 = vsel %vm1562, %v1554, %v1327
    %v1588 = vsel %vm1562, %v1555, %v1328
    %v1589 = vsel %vm1562, %v1556, %v1329
    %v1590 = vsel %vm1562, %v1557, %v1330
    %v1591 = vsel %vm1562, %v1558, %v1331
    %v1592 = vsel %vm1562, %v1559, %v1332
    %v1593 = vsel %vm1562, %v1560, %v1333
    %v1594 = vsel %vm1562, %v1561, %v1334
    %vm1595 = vcmask 1044480
    %v1596 = vsel %vm1595, %v1563, %v1111
    %v1597 = vsel %vm1595, %v1564, %v1112
    %v1598 = vsel %vm1595, %v1565, %v1113
    %v1599 = vsel %vm1595, %v1566, %v1114
    %v1600 = vsel %vm1595, %v1567, %v1115
    %v1601 = vsel %vm1595, %v1568, %v1116
    %v1602 = vsel %vm1595, %v1569, %v1117
    %v1603 = vsel %vm1595, %v1570, %v1118
    %v1604 = vsel %vm1595, %v1571, %v1119
    %v1605 = vsel %vm1595, %v1572, %v1120
    %v1606 = vsel %vm1595, %v1573, %v1121
    %v1607 = vsel %vm1595, %v1574, %v1122
    %v1608 = vsel %vm1595, %v1575, %v1123
    %v1609 = vsel %vm1595, %v1576, %v1124
    %v1610 = vsel %vm1595, %v1577, %v1125
    %v1611 = vsel %vm1595, %v1578, %v1126
    %v1612 = vsel %vm1595, %v1579, %v1127
    %v1613 = vsel %vm1595, %v1580, %v1128
    %v1614 = vsel %vm1595, %v1581, %v1129
    %v1615 = vsel %vm1595, %v1582, %v1130
    %v1616 = vsel %vm1595, %v1583, %v1131
    %v1617 = vsel %vm1595, %v1584, %v1132
    %v1618 = vsel %vm1595, %v1585, %v1133
    %v1619 = vsel %vm1595, %v1586, %v1134
    %v1620 = vsel %vm1595, %v1587, %v1135
    %v1621 = vsel %vm1595, %v1588, %v1136
    %v1622 = vsel %vm1595, %v1589, %v1137
    %v1623 = vsel %vm1595, %v1590, %v1138
    %v1624 = vsel %vm1595, %v1591, %v1139
    %v1625 = vsel %vm1595, %v1592, %v1140
    %v1626 = vsel %vm1595, %v1593, %v1141
    %v1627 = vsel %vm1595, %v1594, %v1142
    %vm1628 = vcmask 1045504
    %v1629 = vsel %vm1628, %v1596, %v1207
    %v1630 = vsel %vm1628, %v1597, %v1208
    %v1631 = vsel %vm1628, %v1598, %v1209
    %v1632 = vsel %vm1628, %v1599, %v1210
    %v1633 = vsel %vm1628, %v1600, %v1211
    %v1634 = vsel %vm1628, %v1601, %v1212
    %v1635 = vsel %vm1628, %v1602, %v1213
    %v1636 = vsel %vm1628, %v1603, %v1214
    %v1637 = vsel %vm1628, %v1604, %v1215
    %v1638 = vsel %vm1628, %v1605, %v1216
    %v1639 = vsel %vm1628, %v1606, %v1217
    %v1640 = vsel %vm1628, %v1607, %v1218
    %v1641 = vsel %vm1628, %v1608, %v1219
    %v1642 = vsel %vm1628, %v1609, %v1220
    %v1643 = vsel %vm1628, %v1610, %v1221
    %v1644 = vsel %vm1628, %v1611, %v1222
    %v1645 = vsel %vm1628, %v1612, %v1223
    %v1646 = vsel %vm1628, %v1613, %v1224
    %v1647 = vsel %vm1628, %v1614, %v1225
    %v1648 = vsel %vm1628, %v1615, %v1226
    %v1649 = vsel %vm1628, %v1616, %v1227
    %v1650 = vsel %vm1628, %v1617, %v1228
    %v1651 = vsel %vm1628, %v1618, %v1229
    %v1652 = vsel %vm1628, %v1619, %v1230
    %v1653 = vsel %vm1628, %v1620, %v1231
    %v1654 = vsel %vm1628, %v1621, %v1232
    %v1655 = vsel %vm1628, %v1622, %v1233
    %v1656 = vsel %vm1628, %v1623, %v1234
    %v1657 = vsel %vm1628, %v1624, %v1235
    %v1658 = vsel %vm1628, %v1625, %v1236
    %v1659 = vsel %vm1628, %v1626, %v1237
    %v1660 = vsel %vm1628, %v1627, %v1238
    %vm1661 = vcmask 1046528
    %v1662 = vsel %vm1661, %v1629, %v1399
    %v1663 = vsel %vm1661, %v1630, %v1400
    %v1664 = vsel %vm1661, %v1631, %v1401
    %v1665 = vsel %vm1661, %v1632, %v1402
    %v1666 = vsel %vm1661, %v1633, %v1403
    %v1667 = vsel %vm1661, %v1634, %v1404
    %v1668 = vsel %vm1661, %v1635, %v1405
    %v1669 = vsel %vm1661, %v1636, %v1406
    %v1670 = vsel %vm1661, %v1637, %v1407
    %v1671 = vsel %vm1661, %v1638, %v1408
    %v1672 = vsel %vm1661, %v1639, %v1409
    %v1673 = vsel %vm1661, %v1640, %v1410
    %v1674 = vsel %vm1661, %v1641, %v1411
    %v1675 = vsel %vm1661, %v1642, %v1412
    %v1676 = vsel %vm1661, %v1643, %v1413
    %v1677 = vsel %vm1661, %v1644, %v1414
    %v1678 = vsel %vm1661, %v1645, %v1415
    %v1679 = vsel %vm1661, %v1646, %v1416
    %v1680 = vsel %vm1661, %v1647, %v1417
    %v1681 = vsel %vm1661, %v1648, %v1418
    %v1682 = vsel %vm1661, %v1649, %v1419
    %v1683 = vsel %vm1661, %v1650, %v1420
    %v1684 = vsel %vm1661, %v1651, %v1421
    %v1685 = vsel %vm1661, %v1652, %v1422
    %v1686 = vsel %vm1661, %v1653, %v1423
    %v1687 = vsel %vm1661, %v1654, %v1424
    %v1688 = vsel %vm1661, %v1655, %v1425
    %v1689 = vsel %vm1661, %v1656, %v1426
    %v1690 = vsel %vm1661, %v1657, %v1427
    %v1691 = vsel %vm1661, %v1658, %v1428
    %v1692 = vsel %vm1661, %v1659, %v1429
    %v1693 = vsel %vm1661, %v1660, %v1430
    %1694 = vst [vmem:[#allocation5] sm:$0xff] %v1662
    %1695 = vst [vmem:[#allocation5 + $0x8] sm:$0xff] %v1663
    %1696 = vst [vmem:[#allocation5 + $0x10] sm:$0xff] %v1664
    %1697 = vst [vmem:[#allocation5 + $0x18] sm:$0xff] %v1665
    %1698 = vst [vmem:[#allocation5 + $0x20] sm:$0xff] %v1666
    %1699 = vst [vmem:[#allocation5 + $0x28] sm:$0xff] %v1667
    %1700 = vst [vmem:[#allocation5 + $0x30] sm:$0xff] %v1668
    %1701 = vst [vmem:[#allocation5 + $0x38] sm:$0xff] %v1669
    %1702 = vst [vmem:[#allocation5 + $0x40] sm:$0xff] %v1670
    %1703 = vst [vmem:[#allocation5 + $0x48] sm:$0xff] %v1671
    %1704 = vst [vmem:[#allocation5 + $0x50] sm:$0xff] %v1672
    %1705 = vst [vmem:[#allocation5 + $0x58] sm:$0xff] %v1673
    %1706 = vst [vmem:[#allocation5 + $0x60] sm:$0xff] %v1674
    %1707 = vst [vmem:[#allocation5 + $0x68] sm:$0xff] %v1675
    %1708 = vst [vmem:[#allocation5 + $0x70] sm:$0xff] %v1676
    %1709 = vst [vmem:[#allocation5 + $0x78] sm:$0xff] %v1677
    %1710 = vst [vmem:[#allocation5 + $0x80] sm:$0xff] %v1678
    %1711 = vst [vmem:[#allocation5 + $0x88] sm:$0xff] %v1679
    %1712 = vst [vmem:[#allocation5 + $0x90] sm:$0xff] %v1680
    %1713 = vst [vmem:[#allocation5 + $0x98] sm:$0xff] %v1681
    %1714 = vst [vmem:[#allocation5 + $0xa0] sm:$0xff] %v1682
    %1715 = vst [vmem:[#allocation5 + $0xa8] sm:$0xff] %v1683
    %1716 = vst [vmem:[#allocation5 + $0xb0] sm:$0xff] %v1684
    %1717 = vst [vmem:[#allocation5 + $0xb8] sm:$0xff] %v1685
    %1718 = vst [vmem:[#allocation5 + $0xc0] sm:$0xff] %v1686
    %1719 = vst [vmem:[#allocation5 + $0xc8] sm:$0xff] %v1687
    %1720 = vst [vmem:[#allocation5 + $0xd0] sm:$0xff] %v1688
    %1721 = vst [vmem:[#allocation5 + $0xd8] sm:$0xff] %v1689
    %1722 = vst [vmem:[#allocation5 + $0xe0] sm:$0xff] %v1690
    %1723 = vst [vmem:[#allocation5 + $0xe8] sm:$0xff] %v1691
    %1724 = vst [vmem:[#allocation5 + $0xf0] sm:$0xff] %v1692
    %1725 = vst [vmem:[#allocation5 + $0xf8] sm:$0xff] %v1693
    // Predicated region
    $region10: #{tpu_custom_call.1} parent=1 // pred_check
      _
    $region11: #{tpu_custom_call.1} parent=1 // pred_check_branch
      %1727 = sbr.rel (0) target = $region13
    $region12: #{tpu_custom_call.1} parent=1 // pred_region
      %1729 = vsyncadd [#allocation4], 0
      %s1731 = sshll.u32 [#allocation5], 4
      %s1732 = int_to_ptr.vmem [resolvable:$true] %s1731
      %s1733 = sshll.u32 %s1, 4
      %s1734 = int_to_ptr.hbm [resolvable:$true] %s1733
      %1736 = dma.vmem_to_hbm [thread:$0]  %s1732, 4096, %s1734, [#allocation4]
    $region13: #{tpu_custom_call.1} parent=1 // pred_fallthru
      _
    // Predicated region
    $region14: #{tpu_custom_call.1} parent=1 // pred_check
      _
    $region15: #{tpu_custom_call.1} parent=1 // pred_check_branch
      %1738 = sbr.rel (0) target = $region17
    $region16: #{tpu_custom_call.1} parent=1 // pred_region
      %1740 = dma.done [#allocation4], 4096
    $region17: #{tpu_custom_call.1} parent=1 // pred_fallthru
      _
    %1741 = vsyncpa [#allocation3], 1
    %1742 = vsyncpa [#allocation4], 1

</llo_original>
